<compile_context>
chip_gen: v7x
topology: tpu7x:2x2x1
jax: 0.10.0
libtpu: 0.0.40
codegen_flags: <defaults>
</compile_context>

<pallas_src>
import functools

import numpy as np
import jax
import jax.numpy as jnp
from jax.experimental import pallas as pl
from jax.experimental.pallas import tpu as pltpu


@functools.lru_cache(maxsize=None)
def _combined_interp_matrix(in_features: int, out_features: int, k: int) -> np.ndarray:
    """Block-diagonal M[(o, m), (o, p)] = A[p, m], precomputed host-side.

    A[p, m] is the linear-interpolation weight of control point m at
    t_p = linspace(0, 1, in_features)[p], mirroring _spline_interpolate:
    t_scaled = t*k, j = clamp(floor(t_scaled), 0, k-1), lerp cv[j] -> cv[j+1].
    Folding A.T per output feature into one (O*K1, O*I) matrix lets the final
    contraction produce a lane-dense (B, O*I) output in a single MXU op.
    (For large O this block-diagonal fold scales as O^2; switch to a per-o
    batched contraction with A.T in that regime.)
    """
    k1 = k + 1
    t = np.linspace(0.0, 1.0, in_features, dtype=np.float32)
    ts = t * np.float32(k)
    j = np.clip(np.floor(ts), 0, k - 1).astype(np.int32)
    tl = (ts - j).astype(np.float32)
    a = np.zeros((in_features, k1), np.float32)
    rows = np.arange(in_features)
    a[rows, j] += 1.0 - tl
    a[rows, j + 1] += tl                        # A: (I, K1)
    m = np.zeros((out_features * k1, out_features * in_features), np.float32)
    for o in range(out_features):
        m[o * k1:(o + 1) * k1, o * in_features:(o + 1) * in_features] = a.T
    return m                                    # (O*K1, O*I)


def _spline_linear_kernel(x_ref, e_ref, cv_ref, m_ref, o_ref):
    # x_ref:  (B, I)      input batch
    # e_ref:  (C, I)      expansion matrix
    # cv_ref: (O*K1, C)   control values, flattened over (o, m)
    # m_ref:  (O*K1, O*I) block-diagonal interpolation matrix (static)
    # o_ref:  (B, O*I)    lane-dense output
    # z[b, c] = sum_i x[b, i] * E[c, i]   -- the only reduction over in_features
    z = jax.lax.dot_general(
        x_ref[...], e_ref[...],
        dimension_numbers=(((1,), (1,)), ((), ())),
        preferred_element_type=jnp.float32)                      # (B, C)
    # u[b, o*K1 + m] = sum_c z[b, c] * cv[o, m, c]
    u = jax.lax.dot_general(
        z, cv_ref[...],
        dimension_numbers=(((1,), (1,)), ((), ())),
        preferred_element_type=jnp.float32)                      # (B, O*K1)
    # y[b, o*I + p] = sum_m u[b, o*K1 + m] * A[p, m]   (lane-dense store, 128 wide)
    o_ref[...] = jnp.dot(u, m_ref[...], preferred_element_type=jnp.float32)


def correct_spline_linear(x, control_points, control_values, expansion_matrix, k=3):
    """Pallas TPU forward of CorrectSplineLinear.

    Returns y of shape (B, out_features, in_features) with
        y[b, o, p] = sum_i x[b, i] * W[o, p, i],  W[o] = interp(cv[o]) @ E.
    """
    del control_points  # only its length (k+1) is used by the reference forward
    B, I = x.shape
    O, K1, C = control_values.shape
    assert K1 == k + 1
    assert expansion_matrix.shape == (C, I)

    m = jnp.asarray(_combined_interp_matrix(I, O, k))            # (O*K1, O*I)
    cv_flat = control_values.reshape(O * K1, C)                  # (O*K1, C)

    # NOTE: at realistic sizes, cast x / expansion_matrix / control_values to
    # bfloat16 here and keep preferred_element_type=float32 (f32 accumulate);
    # kept in f32 at these tiny test shapes.
    y_flat = pl.pallas_call(
        _spline_linear_kernel,
        out_shape=jax.ShapeDtypeStruct((B, O * I), jnp.float32),
        in_specs=[pl.BlockSpec(memory_space=pltpu.MemorySpace.VMEM)] * 4,
        out_specs=pl.BlockSpec(memory_space=pltpu.MemorySpace.VMEM),
    )(x, expansion_matrix, cv_flat, m)

    return y_flat.reshape(B, O, I)                               # free reshape, no transpose


if __name__ == "__main__":
    key = jax.random.PRNGKey(0)
    k = 3
    in_features, out_features, batch = 16, 8, 2
    compressed_dim = max(1, in_features // 4)

    k1, k2, k3, k4 = jax.random.split(key, 4)
    control_points = jax.random.normal(k1, (out_features, k + 1), jnp.float32)
    control_values = jax.random.normal(
        k2, (out_features, k + 1, compressed_dim), jnp.float32)
    expansion_matrix = jax.random.normal(
        k3, (compressed_dim, in_features), jnp.float32)
    x = jax.random.normal(k4, (batch, in_features), jnp.float32)

    y = correct_spline_linear(x, control_points, control_values,
                              expansion_matrix, k=k)
    y = jax.block_until_ready(y)

    # Pure-JAX reference: literal weight reconstruction (interp -> W -> y).
    t = jnp.linspace(0.0, 1.0, in_features, dtype=jnp.float32)
    ts = t * k
    j = jnp.clip(jnp.floor(ts), 0, k - 1).astype(jnp.int32)
    tl = ts - j.astype(jnp.float32)
    cv_lo = control_values[:, j, :]                              # (O, I, C)
    cv_hi = control_values[:, j + 1, :]                          # (O, I, C)
    interp = cv_lo * (1.0 - tl)[None, :, None] + cv_hi * tl[None, :, None]
    w_full = jnp.einsum('opc,ci->opi', interp, expansion_matrix)  # (O, I, I)
    y_ref = jnp.einsum('bi,opi->bop', x, w_full)                  # (B, O, I)

    assert y.shape == (batch, out_features, in_features)
    assert jnp.allclose(y, y_ref, rtol=1e-4, atol=1e-4)
    print("KERNEL_OK")
</pallas_src>

<mosaic_0001>
module attributes {stable_mosaic.version = 11 : i64} {
  func.func @_spline_linear_kernel(%arg0: memref<2x16xf32, #tpu.memory_space<vmem>>, %arg1: memref<4x16xf32, #tpu.memory_space<vmem>>, %arg2: memref<32x4xf32, #tpu.memory_space<vmem>>, %arg3: memref<32x128xf32, #tpu.memory_space<vmem>>, %arg4: memref<2x128xf32, #tpu.memory_space<vmem>>) attributes {dimension_semantics = [], scalar_prefetch = 0 : i64, scratch_operands = 0 : i64, tpu.core_type = #tpu.core_type<tc>} {
    %c0 = arith.constant 0 : index
    %c0_0 = arith.constant 0 : index
    %0 = vector.load %arg0[%c0, %c0_0] : memref<2x16xf32, #tpu.memory_space<vmem>>, vector<2x16xf32>
    %c0_1 = arith.constant 0 : index
    %c0_2 = arith.constant 0 : index
    %1 = vector.load %arg1[%c0_1, %c0_2] : memref<4x16xf32, #tpu.memory_space<vmem>>, vector<4x16xf32>
    %cst = arith.constant dense<0.000000e+00> : vector<2x4xf32>
    %2 = tpu.matmul %0, %1, %cst {dimension_numbers = #tpu.dot_dimension_numbers<[1], [1], [0], [0], [0, 0, 1, 0], [], []>} : vector<2x16xf32>, vector<4x16xf32>, vector<2x4xf32> -> vector<2x4xf32>
    %c0_3 = arith.constant 0 : index
    %c0_4 = arith.constant 0 : index
    %3 = vector.load %arg2[%c0_3, %c0_4] : memref<32x4xf32, #tpu.memory_space<vmem>>, vector<32x4xf32>
    %cst_5 = arith.constant dense<0.000000e+00> : vector<2x32xf32>
    %4 = tpu.matmul %2, %3, %cst_5 {dimension_numbers = #tpu.dot_dimension_numbers<[1], [1], [0], [0], [0, 0, 1, 0], [], []>} : vector<2x4xf32>, vector<32x4xf32>, vector<2x32xf32> -> vector<2x32xf32>
    %c0_6 = arith.constant 0 : index
    %c0_7 = arith.constant 0 : index
    %5 = vector.load %arg3[%c0_6, %c0_7] : memref<32x128xf32, #tpu.memory_space<vmem>>, vector<32x128xf32>
    %cst_8 = arith.constant dense<0.000000e+00> : vector<2x128xf32>
    %6 = tpu.matmul %4, %5, %cst_8 {dimension_numbers = #tpu.dot_dimension_numbers<[1], [0], [0], [1], [0, 0, 1, 1], [], []>} : vector<2x32xf32>, vector<32x128xf32>, vector<2x128xf32> -> vector<2x128xf32>
    %c0_9 = arith.constant 0 : index
    %c0_10 = arith.constant 0 : index
    %7 = vector.load %arg4[%c0_9, %c0_10] : memref<2x128xf32, #tpu.memory_space<vmem>>, vector<2x128xf32>
    tpu.vector_store %arg4[%c0_9, %c0_10], %6 {strides = array<i32>} : memref<2x128xf32, #tpu.memory_space<vmem>>, vector<2x128xf32>,
    return
  }
}

</mosaic_0001>

<llo_original>
// kernel: tpu_custom_call.1
$region0: #{tpu_custom_call.1}
  #allocation0 [shape = 'u32[]', space=smem, size = 0x4, offset = 0x4, fixed_abs, tag = 'smem constant byte address 0x4 - core index']
  #allocation1 [shape = 'u32[144,128]{1,0:T(1,128)}', space=vmem, size = 0x12000, scoped, tag = 'internal scratch']
  %s0 = inlined_call_operand.vmem [shape: f32[2,16], index: 0, kind: input, shape index: {}]
  %s1 = inlined_call_operand.vmem [shape: f32[4,16], index: 1, kind: input, shape index: {}]
  %s2 = inlined_call_operand.vmem [shape: f32[32,4], index: 2, kind: input, shape index: {}]
  %s3 = inlined_call_operand.vmem [shape: f32[32,128], index: 3, kind: input, shape index: {}]
  %s4 = inlined_call_operand.hbm [shape: f32[2,128], index: 4, kind: output, shape index: {}]
  %s5 = sld [smem:[#allocation0]]
  $region26: #{tpu_custom_call.1} parent=0
    _
  %s7 = ssub.s32 1, %s5
  %s8 = scalar_select 0, %s7, %s5
  $region1: #{tpu_custom_call.1} parent=0
    #allocation2 [shape = 'u8[1024]{0}', space=vmem, size = 0x400, scoped, tag = 'output window, operand 0, single buffered']
    #allocation3 [shape = 's32[1]{0}', space=sflag, size = 0x4, scoped, tag = 'scoped memory for tpu_custom_call.1']
    %9 = vsyncpa [#allocation3], 0
    // Predicated region
    $region2: #{tpu_custom_call.1} parent=1 // pred_check
      _
    $region3: #{tpu_custom_call.1} parent=1 // pred_check_branch
      %11 = sbr.rel (0) target = $region5
    $region4: #{tpu_custom_call.1} parent=1 // pred_region
      _
    $region5: #{tpu_custom_call.1} parent=1 // pred_fallthru
      _
    // Predicated region
    $region6: #{tpu_custom_call.1} parent=1 // pred_check
      _
    $region7: #{tpu_custom_call.1} parent=1 // pred_check_branch
      %13 = sbr.rel (0) target = $region9
    $region8: #{tpu_custom_call.1} parent=1 // pred_region
      _
    $region9: #{tpu_custom_call.1} parent=1 // pred_fallthru
      _
    // Predicated region
    $region10: #{tpu_custom_call.1} parent=1 // pred_check
      _
    $region11: #{tpu_custom_call.1} parent=1 // pred_check_branch
      %15 = sbr.rel (0) target = $region13
    $region12: #{tpu_custom_call.1} parent=1 // pred_region
      _
    $region13: #{tpu_custom_call.1} parent=1 // pred_fallthru
      _
    // Predicated region
    $region14: #{tpu_custom_call.1} parent=1 // pred_check
      _
    $region15: #{tpu_custom_call.1} parent=1 // pred_check_branch
      %17 = sbr.rel (0) target = $region17
    $region16: #{tpu_custom_call.1} parent=1 // pred_region
      _
    $region17: #{tpu_custom_call.1} parent=1 // pred_fallthru
      _
    %v18 = vld [vmem:[%s0] sm:$0x3]
    %v19 = vld [vmem:[%s1] sm:$0xf]
    %vm20 = vcmask 130048
    %v22 = vsel %vm20, %v18, 0
    %v25 = vsel %vm20, %v19, 0
    %27 = vmatprep.subr.mxu0 0.0
    %28 = vmatpush1.xpose.msra.mxu0 %v25
    %29 = vmatprep.subr.mxu0 0.0
    %30 = vmatpush1.xpose.msra.mxu0 0.0
    %31 = vmatprep.subr.mxu0 0.0
    %32 = vmatpush1.xpose.msra.mxu0 0.0
    %33 = vmatprep.subr.mxu0 0.0
    %34 = vmatpush1.xpose.msra.mxu0 0.0
    %35 = vmatprep.subr.mxu0 0.0
    %36 = vmatpush1.xpose.msra.mxu0 0.0
    %37 = vmatprep.subr.mxu0 0.0
    %38 = vmatpush1.xpose.msra.mxu0 0.0
    %39 = vmatprep.subr.mxu0 0.0
    %40 = vmatpush1.xpose.msra.mxu0 0.0
    %41 = vmatprep.subr.mxu0 0.0
    %42 = vmatpush1.xpose.msra.mxu0 0.0
    %43 = vmatprep.subr.mxu0 0.0
    %44 = vmatpush1.xpose.msra.mxu0 0.0
    %45 = vmatprep.subr.mxu0 0.0
    %46 = vmatpush1.xpose.msra.mxu0 0.0
    %47 = vmatprep.subr.mxu0 0.0
    %48 = vmatpush1.xpose.msra.mxu0 0.0
    %49 = vmatprep.subr.mxu0 0.0
    %50 = vmatpush1.xpose.msra.mxu0 0.0
    %51 = vmatprep.subr.mxu0 0.0
    %52 = vmatpush1.xpose.msra.mxu0 0.0
    %53 = vmatprep.subr.mxu0 0.0
    %54 = vmatpush1.xpose.msra.mxu0 0.0
    %55 = vmatprep.subr.mxu0 0.0
    %56 = vmatpush1.xpose.msra.mxu0 0.0
    %57 = vmatprep.subr.mxu0 0.0
    %58 = vmatpush1.xpose.msra.mxu0 0.0
    %59 = vmatprep.subr.mxu0 0.0
    %60 = vmatpush1.xpose.msra.mxu0 0.0
    %61 = vmatprep.subr.mxu0 0.0
    %62 = vmatpush1.xpose.msra.mxu0 0.0
    %63 = vmatprep.subr.mxu0 0.0
    %64 = vmatpush1.xpose.msra.mxu0 0.0
    %65 = vmatprep.subr.mxu0 0.0
    %66 = vmatpush1.xpose.msra.mxu0 0.0
    %67 = vmatprep.subr.mxu0 0.0
    %68 = vmatpush1.xpose.msra.mxu0 0.0
    %69 = vmatprep.subr.mxu0 0.0
    %70 = vmatpush1.xpose.msra.mxu0 0.0
    %71 = vmatprep.subr.mxu0 0.0
    %72 = vmatpush1.xpose.msra.mxu0 0.0
    %73 = vmatprep.subr.mxu0 0.0
    %74 = vmatpush1.xpose.msra.mxu0 0.0
    %75 = vmatprep.subr.mxu0 0.0
    %76 = vmatpush1.xpose.msra.mxu0 0.0
    %77 = vmatprep.subr.mxu0 0.0
    %78 = vmatpush1.xpose.msra.mxu0 0.0
    %79 = vmatprep.subr.mxu0 0.0
    %80 = vmatpush1.xpose.msra.mxu0 0.0
    %81 = vmatprep.subr.mxu0 0.0
    %82 = vmatpush1.xpose.msra.mxu0 0.0
    %83 = vmatprep.subr.mxu0 0.0
    %84 = vmatpush1.xpose.msra.mxu0 0.0
    %85 = vmatprep.subr.mxu0 0.0
    %86 = vmatpush1.xpose.msra.mxu0 0.0
    %87 = vmatprep.subr.mxu0 0.0
    %88 = vmatpush1.xpose.msra.mxu0 0.0
    %89 = vmatprep.subr.mxu0 0.0
    %90 = vmatpush1.xpose.msra.mxu0 0.0
    %91 = vmatprep.mubr.f32.mxu0 0.0
    %92 = vmatmul.mubr.f32.gmra.mrb[0].mxu0 %v22
    %v93 = vpop.f32.mrb[0].mxu0
    %v94 = vadd.f32 0.0, %v93
    %v95 = vpop.f32.mrb[0].mxu0
    %96 = vdwg.mxu0
    %v97 = vld [vmem:[%s2] sm:$0xff]
    %v98 = vld [vmem:[%s2 + $0x8] sm:$0xff]
    %v99 = vld [vmem:[%s2 + $0x10] sm:$0xff]
    %v100 = vld [vmem:[%s2 + $0x18] sm:$0xff]
    %vm101 = vcmask 31744
    %v103 = vsel %vm101, %v94, 0
    %v106 = vsel %vm101, %v97, 0
    %v109 = vsel %vm101, %v98, 0
    %v112 = vsel %vm101, %v99, 0
    %v115 = vsel %vm101, %v100, 0
    %117 = vmatprep.subr.mxu0 0.0
    %118 = vmatpush1.xpose.msra.mxu0 %v106
    %119 = vmatprep.subr.mxu0 0.0
    %120 = vmatpush1.xpose.msra.mxu0 %v109
    %121 = vmatprep.subr.mxu0 0.0
    %122 = vmatpush1.xpose.msra.mxu0 %v112
    %123 = vmatprep.subr.mxu0 0.0
    %124 = vmatpush1.xpose.msra.mxu0 %v115
    %125 = vmatprep.subr.mxu0 0.0
    %126 = vmatpush1.xpose.msra.mxu0 0.0
    %127 = vmatprep.subr.mxu0 0.0
    %128 = vmatpush1.xpose.msra.mxu0 0.0
    %129 = vmatprep.subr.mxu0 0.0
    %130 = vmatpush1.xpose.msra.mxu0 0.0
    %131 = vmatprep.subr.mxu0 0.0
    %132 = vmatpush1.xpose.msra.mxu0 0.0
    %133 = vmatprep.subr.mxu0 0.0
    %134 = vmatpush1.xpose.msra.mxu0 0.0
    %135 = vmatprep.subr.mxu0 0.0
    %136 = vmatpush1.xpose.msra.mxu0 0.0
    %137 = vmatprep.subr.mxu0 0.0
    %138 = vmatpush1.xpose.msra.mxu0 0.0
    %139 = vmatprep.subr.mxu0 0.0
    %140 = vmatpush1.xpose.msra.mxu0 0.0
    %141 = vmatprep.subr.mxu0 0.0
    %142 = vmatpush1.xpose.msra.mxu0 0.0
    %143 = vmatprep.subr.mxu0 0.0
    %144 = vmatpush1.xpose.msra.mxu0 0.0
    %145 = vmatprep.subr.mxu0 0.0
    %146 = vmatpush1.xpose.msra.mxu0 0.0
    %147 = vmatprep.subr.mxu0 0.0
    %148 = vmatpush1.xpose.msra.mxu0 0.0
    %149 = vmatprep.subr.mxu0 0.0
    %150 = vmatpush1.xpose.msra.mxu0 0.0
    %151 = vmatprep.subr.mxu0 0.0
    %152 = vmatpush1.xpose.msra.mxu0 0.0
    %153 = vmatprep.subr.mxu0 0.0
    %154 = vmatpush1.xpose.msra.mxu0 0.0
    %155 = vmatprep.subr.mxu0 0.0
    %156 = vmatpush1.xpose.msra.mxu0 0.0
    %157 = vmatprep.subr.mxu0 0.0
    %158 = vmatpush1.xpose.msra.mxu0 0.0
    %159 = vmatprep.subr.mxu0 0.0
    %160 = vmatpush1.xpose.msra.mxu0 0.0
    %161 = vmatprep.subr.mxu0 0.0
    %162 = vmatpush1.xpose.msra.mxu0 0.0
    %163 = vmatprep.subr.mxu0 0.0
    %164 = vmatpush1.xpose.msra.mxu0 0.0
    %165 = vmatprep.subr.mxu0 0.0
    %166 = vmatpush1.xpose.msra.mxu0 0.0
    %167 = vmatprep.subr.mxu0 0.0
    %168 = vmatpush1.xpose.msra.mxu0 0.0
    %169 = vmatprep.subr.mxu0 0.0
    %170 = vmatpush1.xpose.msra.mxu0 0.0
    %171 = vmatprep.subr.mxu0 0.0
    %172 = vmatpush1.xpose.msra.mxu0 0.0
    %173 = vmatprep.subr.mxu0 0.0
    %174 = vmatpush1.xpose.msra.mxu0 0.0
    %175 = vmatprep.subr.mxu0 0.0
    %176 = vmatpush1.xpose.msra.mxu0 0.0
    %177 = vmatprep.subr.mxu0 0.0
    %178 = vmatpush1.xpose.msra.mxu0 0.0
    %179 = vmatprep.subr.mxu0 0.0
    %180 = vmatpush1.xpose.msra.mxu0 0.0
    %181 = vmatprep.mubr.f32.mxu0 0.0
    %182 = vmatmul.mubr.f32.gmra.mrb[0].mxu0 %v103
    %v183 = vpop.f32.mrb[0].mxu0
    %v184 = vadd.f32 0.0, %v183
    %v185 = vpop.f32.mrb[0].mxu0
    %186 = vdwg.mxu0
    %v187 = vld [vmem:[%s3] sm:$0xff]
    %v188 = vld [vmem:[%s3 + $0x8] sm:$0xff]
    %v189 = vld [vmem:[%s3 + $0x10] sm:$0xff]
    %v190 = vld [vmem:[%s3 + $0x18] sm:$0xff]
    %vm191 = vcmask 261120
    %v193 = vsel %vm191, %v184, 0
    %195 = vmatprep.subr.mxu0 0.0
    %196 = vmatpush1.msra.mxu0 %v187
    %197 = vmatprep.subr.mxu0 0.0
    %198 = vmatpush1.msra.mxu0 %v188
    %199 = vmatprep.subr.mxu0 0.0
    %200 = vmatpush1.msra.mxu0 %v189
    %201 = vmatprep.subr.mxu0 0.0
    %202 = vmatpush1.msra.mxu0 %v190
    %203 = vmatprep.subr.mxu0 0.0
    %204 = vmatpush1.msra.mxu0 0.0
    %205 = vmatprep.subr.mxu0 0.0
    %206 = vmatpush1.msra.mxu0 0.0
    %207 = vmatprep.subr.mxu0 0.0
    %208 = vmatpush1.msra.mxu0 0.0
    %209 = vmatprep.subr.mxu0 0.0
    %210 = vmatpush1.msra.mxu0 0.0
    %211 = vmatprep.subr.mxu0 0.0
    %212 = vmatpush1.msra.mxu0 0.0
    %213 = vmatprep.subr.mxu0 0.0
    %214 = vmatpush1.msra.mxu0 0.0
    %215 = vmatprep.subr.mxu0 0.0
    %216 = vmatpush1.msra.mxu0 0.0
    %217 = vmatprep.subr.mxu0 0.0
    %218 = vmatpush1.msra.mxu0 0.0
    %219 = vmatprep.subr.mxu0 0.0
    %220 = vmatpush1.msra.mxu0 0.0
    %221 = vmatprep.subr.mxu0 0.0
    %222 = vmatpush1.msra.mxu0 0.0
    %223 = vmatprep.subr.mxu0 0.0
    %224 = vmatpush1.msra.mxu0 0.0
    %225 = vmatprep.subr.mxu0 0.0
    %226 = vmatpush1.msra.mxu0 0.0
    %227 = vmatprep.subr.mxu0 0.0
    %228 = vmatpush1.msra.mxu0 0.0
    %229 = vmatprep.subr.mxu0 0.0
    %230 = vmatpush1.msra.mxu0 0.0
    %231 = vmatprep.subr.mxu0 0.0
    %232 = vmatpush1.msra.mxu0 0.0
    %233 = vmatprep.subr.mxu0 0.0
    %234 = vmatpush1.msra.mxu0 0.0
    %235 = vmatprep.subr.mxu0 0.0
    %236 = vmatpush1.msra.mxu0 0.0
    %237 = vmatprep.subr.mxu0 0.0
    %238 = vmatpush1.msra.mxu0 0.0
    %239 = vmatprep.subr.mxu0 0.0
    %240 = vmatpush1.msra.mxu0 0.0
    %241 = vmatprep.subr.mxu0 0.0
    %242 = vmatpush1.msra.mxu0 0.0
    %243 = vmatprep.subr.mxu0 0.0
    %244 = vmatpush1.msra.mxu0 0.0
    %245 = vmatprep.subr.mxu0 0.0
    %246 = vmatpush1.msra.mxu0 0.0
    %247 = vmatprep.subr.mxu0 0.0
    %248 = vmatpush1.msra.mxu0 0.0
    %249 = vmatprep.subr.mxu0 0.0
    %250 = vmatpush1.msra.mxu0 0.0
    %251 = vmatprep.subr.mxu0 0.0
    %252 = vmatpush1.msra.mxu0 0.0
    %253 = vmatprep.subr.mxu0 0.0
    %254 = vmatpush1.msra.mxu0 0.0
    %255 = vmatprep.subr.mxu0 0.0
    %256 = vmatpush1.msra.mxu0 0.0
    %257 = vmatprep.subr.mxu0 0.0
    %258 = vmatpush1.msra.mxu0 0.0
    %259 = vmatprep.mubr.f32.mxu0 0.0
    %260 = vmatmul.mubr.f32.gmra.mrb[0].mxu0 %v193
    %v261 = vpop.f32.mrb[0].mxu0
    %v262 = vadd.f32 0.0, %v261
    %v263 = vpop.f32.mrb[0].mxu0
    %264 = vdwg.mxu0
    %265 = vst [vmem:[#allocation2] sm:$0x3] %v262
    // Predicated region
    $region18: #{tpu_custom_call.1} parent=1 // pred_check
      _
    $region19: #{tpu_custom_call.1} parent=1 // pred_check_branch
      %267 = sbr.rel (0) target = $region21
    $region20: #{tpu_custom_call.1} parent=1 // pred_region
      %s269 = ssub.s32 32, 32
      %270 = vsyncadd [#allocation3], %s269
      %s272 = sshll.u32 [#allocation2], 4
      %s273 = int_to_ptr.vmem [resolvable:$true] %s272
      %275 = dma.vmem_to_hbm [thread:$0]  %s273, 32, %s4, [#allocation3]
    $region21: #{tpu_custom_call.1} parent=1 // pred_fallthru
      _
    // Predicated region
    $region22: #{tpu_custom_call.1} parent=1 // pred_check
      _
    $region23: #{tpu_custom_call.1} parent=1 // pred_check_branch
      %277 = sbr.rel (0) target = $region25
    $region24: #{tpu_custom_call.1} parent=1 // pred_region
      %278 = dma.done [#allocation3], 32
    $region25: #{tpu_custom_call.1} parent=1 // pred_fallthru
      _
    %279 = vsyncpa [#allocation3], 1

</llo_original>
